<compile_context>
chip_gen: v7x
topology: tpu7x:2x2x1
jax: 0.10.0
libtpu: 0.0.40
codegen_flags: <defaults>
</compile_context>

<pallas_src>
import math

import jax
import jax.numpy as jnp
from jax.experimental import pallas as pl
from jax.experimental.pallas import tpu as pltpu


def _freq_conv_mix_kernel(x_ref, w_ref, o_ref):
    # x_ref: (1, 2, C, S)   one batch element, [real, imag] packed on axis 1
    # w_ref: (2, O, C, S)   all filters (shared across the batch grid axis)
    # o_ref: (1, 2, O, S)
    # out[o, s] = sum_c x[c, s] * W[o, c, s]   (complex multiply, VPU + XLU)
    xr = x_ref[0, 0]          # (C, S)
    xi = x_ref[0, 1]          # (C, S)
    wr = w_ref[0]             # (O, C, S)
    wi = w_ref[1]             # (O, C, S)
    o_ref[0, 0] = jnp.sum(xr[None] * wr - xi[None] * wi, axis=1)   # (O, S)
    o_ref[0, 1] = jnp.sum(xr[None] * wi + xi[None] * wr, axis=1)   # (O, S)


def _freq_conv_eltwise_kernel(x_ref, w_ref, o_ref):
    # x_ref: (1, 2, N)   one batch element, N = C * H * W flattened (lane-dense)
    # w_ref: (2, N)      shared filters, broadcast over batch
    # o_ref: (1, 2, N)
    xr = x_ref[0, 0]
    xi = x_ref[0, 1]
    wr = w_ref[0]
    wi = w_ref[1]
    o_ref[0, 0] = xr * wr - xi * wi
    o_ref[0, 1] = xr * wi + xi * wr


def frequency_conv2d(x, filters, apply_downsample=False):
    """Pallas implementation of FrequencyConv2D.forward.

    x:        complex64 (B, C_in, H, W) with H == W == kernel_size
    filters:  complex64 (C_out, C_in, K, K) if C_in != C_out else (C, K, K)
    """
    xr = jnp.real(x).astype(jnp.float32)
    xi = jnp.imag(x).astype(jnp.float32)
    wr = jnp.real(filters).astype(jnp.float32)
    wi = jnp.imag(filters).astype(jnp.float32)
    B, C, H, W = x.shape

    if apply_downsample:
        # out[:, :, ::2, ::2] depends only on x/filters at the same strided
        # pixels, so decimate the inputs up front and let the kernel compute
        # and write ONLY the strided output (no full-res writeback + re-read).
        xr = xr[:, :, ::2, ::2]
        xi = xi[:, :, ::2, ::2]
        wr = wr[..., ::2, ::2]
        wi = wi[..., ::2, ::2]
        H, W = H // 2, W // 2

    S = H * W  # flattened spatial -> lane axis (256 at full res)

    # NOTE(v7x): at these sizes VMEM use per step is a few hundred KB; when
    # scaling C/K up, budget blocks against v7x's 64 MiB VMEM (not 128 MiB)
    # and set vmem_limit_bytes in CompilerParams accordingly.
    if filters.ndim == 4:  # in_channels != out_channels: mix channels
        O = filters.shape[0]
        xp = jnp.stack([xr, xi], axis=1).reshape(B, 2, C, S)      # (B, 2, C, S)
        wp = jnp.stack([wr, wi], axis=0).reshape(2, O, C, S)      # (2, O, C, S)
        out = pl.pallas_call(
            _freq_conv_mix_kernel,
            out_shape=jax.ShapeDtypeStruct((B, 2, O, S), jnp.float32),
            grid=(B,),
            in_specs=[pl.BlockSpec((1, 2, C, S), lambda b: (b, 0, 0, 0)),
                      pl.BlockSpec((2, O, C, S), lambda b: (0, 0, 0, 0))],
            out_specs=pl.BlockSpec((1, 2, O, S), lambda b: (b, 0, 0, 0)),
            compiler_params=pltpu.CompilerParams(
                dimension_semantics=("parallel",)),
        )(xp, wp)
        out_r = out[:, 0].reshape(B, O, H, W)
        out_i = out[:, 1].reshape(B, O, H, W)
    else:  # in_channels == out_channels: per-channel elementwise complex mul
        N = C * S  # fully flattened -> 1024 (full res) / 256 (downsampled) lanes
        xp = jnp.stack([xr, xi], axis=1).reshape(B, 2, N)         # (B, 2, N)
        wp = jnp.stack([wr, wi], axis=0).reshape(2, N)            # (2, N)
        out = pl.pallas_call(
            _freq_conv_eltwise_kernel,
            out_shape=jax.ShapeDtypeStruct((B, 2, N), jnp.float32),
            grid=(B,),
            in_specs=[pl.BlockSpec((1, 2, N), lambda b: (b, 0, 0)),
                      pl.BlockSpec((2, N), lambda b: (0, 0))],
            out_specs=pl.BlockSpec((1, 2, N), lambda b: (b, 0, 0)),
            compiler_params=pltpu.CompilerParams(
                dimension_semantics=("parallel",)),
        )(xp, wp)
        out_r = out[:, 0].reshape(B, C, H, W)
        out_i = out[:, 1].reshape(B, C, H, W)

    return jax.lax.complex(out_r, out_i)  # complex64


def init_filters(key, out_channels, in_channels, kernel_size):
    """Deterministic He-style complex init mirroring he_complex_init()."""
    if in_channels != out_channels:
        shape = (out_channels, in_channels, kernel_size, kernel_size)
        fan_in = in_channels * kernel_size * kernel_size
        scale_dim = in_channels            # filters.real.size(1)
    else:
        shape = (out_channels, kernel_size, kernel_size)
        fan_in = kernel_size * kernel_size
        scale_dim = kernel_size            # filters.real.size(1)
    gain = math.sqrt(2.0)                  # kaiming_uniform, relu
    bound = gain * math.sqrt(3.0 / fan_in)
    kr, ki = jax.random.split(key)
    wr = jax.random.uniform(kr, shape, jnp.float32, -bound, bound)
    wi = jax.random.uniform(ki, shape, jnp.float32, -bound, bound)
    scale = math.sqrt(2.0 / scale_dim)
    return jax.lax.complex(wr * scale, wi * scale)


if __name__ == "__main__":
    key = jax.random.PRNGKey(0)
    B, C_in, C_out, K = 2, 4, 8, 16     # spatial == kernel_size (required by broadcast)
    k1, k2, k3, k4 = jax.random.split(key, 4)

    x = jax.lax.complex(jax.random.normal(k1, (B, C_in, K, K), jnp.float32),
                        jax.random.normal(k2, (B, C_in, K, K), jnp.float32))

    # --- branch 1: in_channels != out_channels (channel-mixing reduction) ---
    filters_mix = init_filters(k3, C_out, C_in, K)
    out = jax.block_until_ready(frequency_conv2d(x, filters_mix,
                                                 apply_downsample=False))
    ref = jnp.sum(x[:, None, :, :, :] * filters_mix[None, :, :, :, :], axis=2)
    assert out.shape == (B, C_out, K, K)
    assert out.dtype == jnp.complex64
    assert jnp.allclose(out, ref, atol=1e-4, rtol=1e-4)

    # --- branch 1b: channel mixing + downsample (fused strided output) ---
    out1b = jax.block_until_ready(frequency_conv2d(x, filters_mix,
                                                   apply_downsample=True))
    ref1b = ref[:, :, ::2, ::2]
    assert out1b.shape == (B, C_out, K // 2, K // 2)
    assert jnp.allclose(out1b, ref1b, atol=1e-4, rtol=1e-4)

    # --- branch 2: in_channels == out_channels (elementwise) + downsample ---
    filters_same = init_filters(k4, C_in, C_in, K)
    out2 = jax.block_until_ready(frequency_conv2d(x, filters_same,
                                                  apply_downsample=True))
    ref2 = (x * filters_same[None])[:, :, ::2, ::2]
    assert out2.shape == (B, C_in, K // 2, K // 2)
    assert jnp.allclose(out2, ref2, atol=1e-4, rtol=1e-4)

    # --- branch 2b: elementwise, no downsample ---
    out2b = jax.block_until_ready(frequency_conv2d(x, filters_same,
                                                   apply_downsample=False))
    ref2b = x * filters_same[None]
    assert out2b.shape == (B, C_in, K, K)
    assert jnp.allclose(out2b, ref2b, atol=1e-4, rtol=1e-4)

    print("KERNEL_OK")
</pallas_src>

<mosaic_0001>
module attributes {stable_mosaic.version = 11 : i64} {
  func.func @_freq_conv_mix_kernel(%arg0: i32, %arg1: memref<1x2x4x256xf32, #tpu.memory_space<vmem>>, %arg2: memref<2x8x4x256xf32, #tpu.memory_space<vmem>>, %arg3: memref<1x2x8x256xf32, #tpu.memory_space<vmem>>) attributes {dimension_semantics = [#tpu.dimension_semantics<parallel>], iteration_bounds = array<i64: 2>, scalar_prefetch = 0 : i64, scratch_operands = 0 : i64, tpu.core_type = #tpu.core_type<tc>, window_params = [{transform_indices = @transform_0, window_bounds = array<i64: 1, 2, 4, 256>}, {pipeline_mode = #tpu.pipeline_mode<synchronous>, transform_indices = @transform_1, window_bounds = array<i64: 2, 8, 4, 256>}, {transform_indices = @transform_2, window_bounds = array<i64: 1, 2, 8, 256>}]} {
    %c0 = arith.constant 0 : index
    %c0_0 = arith.constant 0 : index
    %c0_1 = arith.constant 0 : index
    %c0_2 = arith.constant 0 : index
    %0 = vector.load %arg1[%c0, %c0_0, %c0_1, %c0_2] : memref<1x2x4x256xf32, #tpu.memory_space<vmem>>, vector<1x1x4x256xf32>
    %1 = vector.shape_cast %0 : vector<1x1x4x256xf32> to vector<4x256xf32>
    %c0_3 = arith.constant 0 : index
    %c1 = arith.constant 1 : index
    %c0_4 = arith.constant 0 : index
    %c0_5 = arith.constant 0 : index
    %2 = vector.load %arg1[%c0_3, %c1, %c0_4, %c0_5] : memref<1x2x4x256xf32, #tpu.memory_space<vmem>>, vector<1x1x4x256xf32>
    %3 = vector.shape_cast %2 : vector<1x1x4x256xf32> to vector<4x256xf32>
    %c0_6 = arith.constant 0 : index
    %c0_7 = arith.constant 0 : index
    %c0_8 = arith.constant 0 : index
    %c0_9 = arith.constant 0 : index
    %4 = vector.load %arg2[%c0_6, %c0_7, %c0_8, %c0_9] : memref<2x8x4x256xf32, #tpu.memory_space<vmem>>, vector<1x8x4x256xf32>
    %5 = vector.shape_cast %4 : vector<1x8x4x256xf32> to vector<8x4x256xf32>
    %c1_10 = arith.constant 1 : index
    %c0_11 = arith.constant 0 : index
    %c0_12 = arith.constant 0 : index
    %c0_13 = arith.constant 0 : index
    %6 = vector.load %arg2[%c1_10, %c0_11, %c0_12, %c0_13] : memref<2x8x4x256xf32, #tpu.memory_space<vmem>>, vector<1x8x4x256xf32>
    %7 = vector.shape_cast %6 : vector<1x8x4x256xf32> to vector<8x4x256xf32>
    %8 = vector.shape_cast %1 : vector<4x256xf32> to vector<1x4x256xf32>
    %9 = vector.broadcast %8 : vector<1x4x256xf32> to vector<8x4x256xf32>
    %10 = arith.mulf %9, %5 : vector<8x4x256xf32>
    %11 = vector.shape_cast %3 : vector<4x256xf32> to vector<1x4x256xf32>
    %12 = vector.broadcast %11 : vector<1x4x256xf32> to vector<8x4x256xf32>
    %13 = arith.mulf %12, %7 : vector<8x4x256xf32>
    %14 = arith.subf %10, %13 : vector<8x4x256xf32>
    %cst = arith.constant dense<0.000000e+00> : vector<8x256xf32>
    %15 = vector.multi_reduction <add>, %14, %cst [1] : vector<8x4x256xf32> to vector<8x256xf32>
    %c0_14 = arith.constant 0 : index
    %c0_15 = arith.constant 0 : index
    %c0_16 = arith.constant 0 : index
    %c0_17 = arith.constant 0 : index
    %16 = vector.load %arg3[%c0_14, %c0_15, %c0_16, %c0_17] : memref<1x2x8x256xf32, #tpu.memory_space<vmem>>, vector<1x1x8x256xf32>
    %17 = vector.shape_cast %16 : vector<1x1x8x256xf32> to vector<8x256xf32>
    %18 = vector.shape_cast %15 : vector<8x256xf32> to vector<1x1x8x256xf32>
    tpu.vector_store %arg3[%c0_14, %c0_15, %c0_16, %c0_17], %18 {strides = array<i32>} : memref<1x2x8x256xf32, #tpu.memory_space<vmem>>, vector<1x1x8x256xf32>,
    %19 = vector.shape_cast %1 : vector<4x256xf32> to vector<1x4x256xf32>
    %20 = vector.broadcast %19 : vector<1x4x256xf32> to vector<8x4x256xf32>
    %21 = arith.mulf %20, %7 : vector<8x4x256xf32>
    %22 = vector.shape_cast %3 : vector<4x256xf32> to vector<1x4x256xf32>
    %23 = vector.broadcast %22 : vector<1x4x256xf32> to vector<8x4x256xf32>
    %24 = arith.mulf %23, %5 : vector<8x4x256xf32>
    %25 = arith.addf %21, %24 : vector<8x4x256xf32>
    %cst_18 = arith.constant dense<0.000000e+00> : vector<8x256xf32>
    %26 = vector.multi_reduction <add>, %25, %cst_18 [1] : vector<8x4x256xf32> to vector<8x256xf32>
    %c0_19 = arith.constant 0 : index
    %c1_20 = arith.constant 1 : index
    %c0_21 = arith.constant 0 : index
    %c0_22 = arith.constant 0 : index
    %27 = vector.load %arg3[%c0_19, %c1_20, %c0_21, %c0_22] : memref<1x2x8x256xf32, #tpu.memory_space<vmem>>, vector<1x1x8x256xf32>
    %28 = vector.shape_cast %27 : vector<1x1x8x256xf32> to vector<8x256xf32>
    %29 = vector.shape_cast %26 : vector<8x256xf32> to vector<1x1x8x256xf32>
    tpu.vector_store %arg3[%c0_19, %c1_20, %c0_21, %c0_22], %29 {strides = array<i32>} : memref<1x2x8x256xf32, #tpu.memory_space<vmem>>, vector<1x1x8x256xf32>,
    return
  }
  func.func @transform_0(%arg0: i32) -> (i32, i32, i32, i32) {
    %c0_i32 = arith.constant 0 : i32
    %c0_i32_0 = arith.constant 0 : i32
    %c0_i32_1 = arith.constant 0 : i32
    %c0_i32_2 = arith.constant 0 : i32
    return %arg0, %c0_i32, %c0_i32_0, %c0_i32_1 : i32, i32, i32, i32
  }
  func.func @transform_1(%arg0: i32) -> (i32, i32, i32, i32) {
    %c0_i32 = arith.constant 0 : i32
    %c0_i32_0 = arith.constant 0 : i32
    %c0_i32_1 = arith.constant 0 : i32
    %c0_i32_2 = arith.constant 0 : i32
    %c0_i32_3 = arith.constant 0 : i32
    return %c0_i32, %c0_i32_0, %c0_i32_1, %c0_i32_2 : i32, i32, i32, i32
  }
  func.func @transform_2(%arg0: i32) -> (i32, i32, i32, i32) {
    %c0_i32 = arith.constant 0 : i32
    %c0_i32_0 = arith.constant 0 : i32
    %c0_i32_1 = arith.constant 0 : i32
    %c0_i32_2 = arith.constant 0 : i32
    return %arg0, %c0_i32, %c0_i32_0, %c0_i32_1 : i32, i32, i32, i32
  }
}

</mosaic_0001>

<llo_original>
// kernel: tpu_custom_call.1
$region0: #{tpu_custom_call.1}
  #allocation0 [shape = 'u32[]', space=smem, size = 0x4, offset = 0x4, fixed_abs, tag = 'smem constant byte address 0x4 - core index']
  #allocation1 [shape = 'u32[144,128]{1,0:T(1,128)}', space=vmem, size = 0x12000, scoped, tag = 'internal scratch']
  %s0 = inlined_call_operand.hbm [shape: f32[2,2,4,256], index: 0, kind: input, shape index: {}]
  %s1 = inlined_call_operand.hbm [shape: f32[2,8,4,256], index: 1, kind: input, shape index: {}]
  %s2 = inlined_call_operand.hbm [shape: f32[2,2,8,256], index: 2, kind: output, shape index: {}]
  %s3 = sld [smem:[#allocation0]]
  $region49: #{tpu_custom_call.1} parent=0
    _
  %s5 = ssub.s32 1, %s3
  %s6 = scalar_select 0, %s5, %s3
  $region1: #{tpu_custom_call.1} parent=0
    #allocation2 [shape = 'u8[16384]{0}', space=vmem, size = 0x4000, scoped, tag = 'input window, operand 0']
    #allocation3 [shape = 's32[2]{0}', space=sflag, size = 0x8, scoped, tag = 'scoped memory for tpu_custom_call.1']
    #allocation4 [shape = 's32[2]{0}', space=sflag, size = 0x8, scoped, tag = 'scoped memory for tpu_custom_call.1']
    #allocation5 [shape = 'u8[65536]{0}', space=vmem, size = 0x10000, scoped, tag = 'input window, operand 1, single buffered']
    #allocation6 [shape = 's32[1]{0}', space=sflag, size = 0x4, scoped, tag = 'scoped memory for tpu_custom_call.1']
    #allocation7 [shape = 'u8[32768]{0}', space=vmem, size = 0x8000, scoped, tag = 'output window, operand 0']
    %7 = vsyncpa [#allocation3], 0
    %s8 = scalar_lea.sflag [#allocation3], 1
    %9 = vsyncpa %s8, 0
    %10 = vsyncpa [#allocation6], 0
    %11 = vsyncpa [#allocation4], 0
    %s12 = scalar_lea.sflag [#allocation4], 1
    %13 = vsyncpa %s12, 0
    loop: start=0, step=1, limit=4
    $region2: #{tpu_custom_call.1} parent=1 // loop_pre_header
      _
    $region3: #{tpu_custom_call.1} parent=1 // loop_header
      %s15 = sphi 0, %s19
      %p16 = scmp.ge.s32.totalorder %s15, 4
      %s25 = sphi 0, %s27
      %s28 = sphi 0, %s25
      %s29 = sphi 0, %s28
      %s45 = sphi 0, %s29
      %s49 = sphi 0, %s49
      %s51 = sphi 0, %s49
      %s52 = sphi 0, %s51
      %s66 = sphi 0, %s52
      %s72 = sphi 0, %s74
      %s75 = sphi 0, %s72
      %s76 = sphi 0, %s75
      %s92 = sphi 0, %s76
    $region4: #{tpu_custom_call.1} parent=1 // loop_header_branch
      %18 = sbr.rel (%p16) target = $region8
    $region5: #{tpu_custom_call.1} parent=1 // loop_body
      %s20 = ssub.s32 %s15, 1
      %s21 = ssub.s32 %s15, 2
      %s22 = sadd.s32 %s15, 1
      %s23 = ssub.s32 %s15, %s22
      %p24 = scmp.eq.s32.totalorder %s23, 0
      %s26 = sadd.s32 %s25, 1
      %s27 = scalar_select %p24, %s25, %s26
      %p30 = pneg %p24
      %p31 = scmp.eq.s32.totalorder %s15, 1
      %p32 = por %p30, %p31
      %p33 = scmp.ne.s32.totalorder %s25, %s28
      %p34 = scmp.eq.s32.totalorder %s15, 0
      %p35 = por %p33, %p34
      %p36 = scmp.ne.s32.totalorder %s25, %s28
      %p37 = scmp.eq.s32.totalorder %s20, 1
      %p38 = por %p36, %p37
      %p39 = scmp.ne.s32.totalorder %s28, %s29
      %p40 = scmp.eq.s32.totalorder %s20, 0
      %p41 = por %p39, %p40
      %p42 = scmp.ne.s32.totalorder %s28, %s29
      %p43 = scmp.eq.s32.totalorder %s21, 1
      %p44 = por %p42, %p43
      %p46 = scmp.ne.s32.totalorder %s29, %s45
      %p47 = scmp.eq.s32.totalorder %s21, 0
      %p48 = por %p46, %p47
      %s50 = sadd.s32 %s49, 1
      %p53 = scmp.eq.s32.totalorder %s15, 1
      %p54 = scmp.ne.s32.totalorder %s49, %s51
      %p55 = scmp.eq.s32.totalorder %s15, 0
      %p56 = por %p54, %p55
      %p57 = scmp.ne.s32.totalorder %s49, %s51
      %p58 = scmp.eq.s32.totalorder %s20, 1
      %p59 = por %p57, %p58
      %p60 = scmp.ne.s32.totalorder %s51, %s52
      %p61 = scmp.eq.s32.totalorder %s20, 0
      %p62 = por %p60, %p61
      %p63 = scmp.ne.s32.totalorder %s51, %s52
      %p64 = scmp.eq.s32.totalorder %s21, 1
      %p65 = por %p63, %p64
      %p67 = scmp.ne.s32.totalorder %s52, %s66
      %p68 = scmp.eq.s32.totalorder %s21, 0
      %p69 = por %p67, %p68
      %s70 = ssub.s32 %s15, %s22
      %p71 = scmp.eq.s32.totalorder %s70, 0
      %s73 = sadd.s32 %s72, 1
      %s74 = scalar_select %p71, %s72, %s73
      %p77 = pneg %p71
      %p78 = scmp.eq.s32.totalorder %s15, 1
      %p79 = por %p77, %p78
      %p80 = scmp.ne.s32.totalorder %s72, %s75
      %p81 = scmp.eq.s32.totalorder %s15, 0
      %p82 = por %p80, %p81
      %p83 = scmp.ne.s32.totalorder %s72, %s75
      %p84 = scmp.eq.s32.totalorder %s20, 1
      %p85 = por %p83, %p84
      %p86 = scmp.ne.s32.totalorder %s75, %s76
      %p87 = scmp.eq.s32.totalorder %s20, 0
      %p88 = por %p86, %p87
      %p89 = scmp.ne.s32.totalorder %s75, %s76
      %p90 = scmp.eq.s32.totalorder %s21, 1
      %p91 = por %p89, %p90
      %p93 = scmp.ne.s32.totalorder %s76, %s92
      %p94 = scmp.eq.s32.totalorder %s21, 0
      %p95 = por %p93, %p94
      %p96 = scmp.le.s32.totalorder 1, %s15
      %p97 = scmp.lt.s32.totalorder %s15, 3
      %p98 = pnand %p96, %p97
      %p99 = pneg %p98
      // Predicated region
      $region9: #{tpu_custom_call.1} parent=5 // pred_check
        _
      $region10: #{tpu_custom_call.1} parent=5 // pred_check_branch
        %101 = sbr.rel (%p98) target = $region12
      $region11: #{tpu_custom_call.1} parent=5 // pred_region
        %s102 = ssub.s32 %s15, 1
        // Predicated region
        $region13: #{tpu_custom_call.1} parent=11 // pred_check
          %p103 = pneg %p62
        $region14: #{tpu_custom_call.1} parent=11 // pred_check_branch
          %105 = sbr.rel (%p103) target = $region16
        $region15: #{tpu_custom_call.1} parent=11 // pred_region
          %s107 = ssub.s32 2048, 2048
          %108 = vsyncadd [#allocation6], %s107
          %s109 = sshll.u32 [#allocation5], 4
          %s110 = int_to_ptr.vmem [resolvable:$true] %s109
          %115 = dma.hbm_to_vmem [thread:$0]  %s1, 2048, %s110, [#allocation6], 128, 128, 8
        $region16: #{tpu_custom_call.1} parent=11 // pred_fallthru
          _
      $region12: #{tpu_custom_call.1} parent=5 // pred_fallthru
        _
      %p116 = scmp.lt.s32.totalorder %s15, 2
      // Predicated region
      $region17: #{tpu_custom_call.1} parent=5 // pred_check
        %p117 = pneg %p116
      $region18: #{tpu_custom_call.1} parent=5 // pred_check_branch
        %119 = sbr.rel (%p117) target = $region20
      $region19: #{tpu_custom_call.1} parent=5 // pred_region
        // Predicated region
        $region21: #{tpu_custom_call.1} parent=19 // pred_check
          %p120 = pneg %p35
        $region22: #{tpu_custom_call.1} parent=19 // pred_check_branch
          %122 = sbr.rel (%p120) target = $region24
        $region23: #{tpu_custom_call.1} parent=19 // pred_region
          %s123 = sand.u32 %s25, 1
          %s124 = scalar_lea.sflag [#allocation3], %s123
          %s125 = sand.u32 %s25, 1
          %s126 = smul.addr %s125, 16
          %s127 = scalar_lea.vmem [#allocation2], %s126
          %s129 = ssub.s32 256, 256
          %130 = vsyncadd %s124, %s129
          %s131 = smul.addr %s15, 4
          %s132 = smul.addr %s131, 64
          %s133 = scalar_lea.hbm %s0, %s132
          %s134 = sshll.u32 %s127, 4
          %s135 = int_to_ptr.vmem [resolvable:$true] %s134
          %140 = dma.hbm_to_vmem [thread:$0]  %s133, 256, %s135, %s124, 128, 128, 8
        $region24: #{tpu_custom_call.1} parent=19 // pred_fallthru
          _
      $region20: #{tpu_custom_call.1} parent=5 // pred_fallthru
        _
      %p141 = scmp.le.s32.totalorder 1, %s15
      %p142 = scmp.lt.s32.totalorder %s15, 3
      %p143 = pnand %p141, %p142
      %p144 = pneg %p143
      // Predicated region
      $region25: #{tpu_custom_call.1} parent=5 // pred_check
        _
      $region26: #{tpu_custom_call.1} parent=5 // pred_check_branch
        %146 = sbr.rel (%p143) target = $region28
      $region27: #{tpu_custom_call.1} parent=5 // pred_region
        %s147 = ssub.s32 %s15, 1
        %s148 = sand.u32 %s28, 1
        %s149 = scalar_lea.sflag [#allocation3], %s148
        %s150 = sand.u32 %s28, 1
        %s151 = smul.addr %s150, 16
        %s152 = scalar_lea.vmem [#allocation2], %s151
        // Predicated region
        $region29: #{tpu_custom_call.1} parent=27 // pred_check
          %p153 = pneg %p41
        $region30: #{tpu_custom_call.1} parent=27 // pred_check_branch
          %155 = sbr.rel (%p153) target = $region32
        $region31: #{tpu_custom_call.1} parent=27 // pred_region
          %156 = dma.done %s149, 256
        $region32: #{tpu_custom_call.1} parent=27 // pred_fallthru
          _
        // Predicated region
        $region33: #{tpu_custom_call.1} parent=27 // pred_check
          %p157 = pneg %p62
        $region34: #{tpu_custom_call.1} parent=27 // pred_check_branch
          %159 = sbr.rel (%p157) target = $region36
        $region35: #{tpu_custom_call.1} parent=27 // pred_region
          %160 = dma.done [#allocation6], 2048
        $region36: #{tpu_custom_call.1} parent=27 // pred_fallthru
          _
        %s161 = sand.u32 %s28, 1
        %s162 = scalar_lea.sflag [#allocation3], %s161
        %s163 = sand.u32 %s28, 1
        %s164 = smul.addr %s163, 16
        %s165 = scalar_lea.vmem [#allocation2], %s164
        %p166 = pneg %p41
        %p167 = pneg %p38
        %p168 = pneg %p62
        %p169 = pneg %p59
        %p170 = pneg %p88
        %p171 = pneg %p85
        %s172 = sand.u32 %s75, 1
        %s173 = scalar_lea.sflag [#allocation4], %s172
        %s174 = sand.u32 %s75, 1
        %s175 = smul.addr %s174, 32
        %s176 = scalar_lea.vmem [#allocation7], %s175
        %v177 = vld [vmem:[%s152] sm:$0xff]
        %s178 = scalar_lea.vmem %s152, 8 [#allocation2]
        %v179 = vld [vmem:[%s178] sm:$0xff]
        %v180 = vld [vmem:[#allocation5] sm:$0xff]
        %v181 = vld [vmem:[#allocation5 + $0x8] sm:$0xff]
        %v182 = vld [vmem:[#allocation5 + $0x10] sm:$0xff]
        %v183 = vld [vmem:[#allocation5 + $0x18] sm:$0xff]
        %v184 = vld [vmem:[#allocation5 + $0x20] sm:$0xff]
        %v185 = vld [vmem:[#allocation5 + $0x28] sm:$0xff]
        %v186 = vld [vmem:[#allocation5 + $0x30] sm:$0xff]
        %v187 = vld [vmem:[#allocation5 + $0x38] sm:$0xff]
        %s188 = scalar_lea.vmem [#allocation5], 64
        %v189 = vld [vmem:[%s188] sm:$0xff]
        %v190 = vld [vmem:[%s188 + $0x8] sm:$0xff]
        %v191 = vld [vmem:[%s188 + $0x10] sm:$0xff]
        %v192 = vld [vmem:[%s188 + $0x18] sm:$0xff]
        %v193 = vld [vmem:[%s188 + $0x20] sm:$0xff]
        %v194 = vld [vmem:[%s188 + $0x28] sm:$0xff]
        %v195 = vld [vmem:[%s188 + $0x30] sm:$0xff]
        %v196 = vld [vmem:[%s188 + $0x38] sm:$0xff]
        %v197 = vmul.f32 %v177, %v180
        %v198 = vmul.f32 %v177, %v181
        %v199 = vmul.f32 %v177, %v182
        %v200 = vmul.f32 %v177, %v183
        %v201 = vmul.f32 %v177, %v184
        %v202 = vmul.f32 %v177, %v185
        %v203 = vmul.f32 %v177, %v186
        %v204 = vmul.f32 %v177, %v187
        %v205 = vmul.f32 %v179, %v189
        %v206 = vmul.f32 %v179, %v190
        %v207 = vmul.f32 %v179, %v191
        %v208 = vmul.f32 %v179, %v192
        %v209 = vmul.f32 %v179, %v193
        %v210 = vmul.f32 %v179, %v194
        %v211 = vmul.f32 %v179, %v195
        %v212 = vmul.f32 %v179, %v196
        %v213 = vsub.f32 %v197, %v205
        %v214 = vsub.f32 %v198, %v206
        %v215 = vsub.f32 %v199, %v207
        %v216 = vsub.f32 %v200, %v208
        %v217 = vsub.f32 %v201, %v209
        %v218 = vsub.f32 %v202, %v210
        %v219 = vsub.f32 %v203, %v211
        %v220 = vsub.f32 %v204, %v212
        %v229 = vcombine.high %v213, %v213
        %v230 = vcombine.high %v214, %v214
        %v231 = vcombine.high %v215, %v215
        %v232 = vcombine.high %v216, %v216
        %v233 = vcombine.high %v217, %v217
        %v234 = vcombine.high %v218, %v218
        %v235 = vcombine.high %v219, %v219
        %v236 = vcombine.high %v220, %v220
        %vm245 = vcmask 1043456
        %v246 = vsel %vm245, %v213, 0.0
        %v247 = vrot.slane %v246, 4
        %v248 = vadd.f32 %v246, %v247
        %v249 = vrot.slane %v248, 2
        %v250 = vadd.f32 %v248, %v249
        %v251 = vrot.slane %v250, 1
        %v252 = vadd.f32 %v250, %v251
        %v253 = vsel %vm245, %v229, 0.0
        %v254 = vrot.slane %v253, 4
        %v255 = vadd.f32 %v253, %v254
        %v256 = vrot.slane %v255, 2
        %v257 = vadd.f32 %v255, %v256
        %v258 = vrot.slane %v257, 1
        %v259 = vadd.f32 %v257, %v258
        %v260 = vsel %vm245, %v214, 0.0
        %v261 = vrot.slane %v260, 4
        %v262 = vadd.f32 %v260, %v261
        %v263 = vrot.slane %v262, 2
        %v264 = vadd.f32 %v262, %v263
        %v265 = vrot.slane %v264, 1
        %v266 = vadd.f32 %v264, %v265
        %v267 = vsel %vm245, %v230, 0.0
        %v268 = vrot.slane %v267, 4
        %v269 = vadd.f32 %v267, %v268
        %v270 = vrot.slane %v269, 2
        %v271 = vadd.f32 %v269, %v270
        %v272 = vrot.slane %v271, 1
        %v273 = vadd.f32 %v271, %v272
        %v274 = vsel %vm245, %v215, 0.0
        %v275 = vrot.slane %v274, 4
        %v276 = vadd.f32 %v274, %v275
        %v277 = vrot.slane %v276, 2
        %v278 = vadd.f32 %v276, %v277
        %v279 = vrot.slane %v278, 1
        %v280 = vadd.f32 %v278, %v279
        %v281 = vsel %vm245, %v231, 0.0
        %v282 = vrot.slane %v281, 4
        %v283 = vadd.f32 %v281, %v282
        %v284 = vrot.slane %v283, 2
        %v285 = vadd.f32 %v283, %v284
        %v286 = vrot.slane %v285, 1
        %v287 = vadd.f32 %v285, %v286
        %v288 = vsel %vm245, %v216, 0.0
        %v289 = vrot.slane %v288, 4
        %v290 = vadd.f32 %v288, %v289
        %v291 = vrot.slane %v290, 2
        %v292 = vadd.f32 %v290, %v291
        %v293 = vrot.slane %v292, 1
        %v294 = vadd.f32 %v292, %v293
        %v295 = vsel %vm245, %v232, 0.0
        %v296 = vrot.slane %v295, 4
        %v297 = vadd.f32 %v295, %v296
        %v298 = vrot.slane %v297, 2
        %v299 = vadd.f32 %v297, %v298
        %v300 = vrot.slane %v299, 1
        %v301 = vadd.f32 %v299, %v300
        %v302 = vsel %vm245, %v217, 0.0
        %v303 = vrot.slane %v302, 4
        %v304 = vadd.f32 %v302, %v303
        %v305 = vrot.slane %v304, 2
        %v306 = vadd.f32 %v304, %v305
        %v307 = vrot.slane %v306, 1
        %v308 = vadd.f32 %v306, %v307
        %v309 = vsel %vm245, %v233, 0.0
        %v310 = vrot.slane %v309, 4
        %v311 = vadd.f32 %v309, %v310
        %v312 = vrot.slane %v311, 2
        %v313 = vadd.f32 %v311, %v312
        %v314 = vrot.slane %v313, 1
        %v315 = vadd.f32 %v313, %v314
        %v316 = vsel %vm245, %v218, 0.0
        %v317 = vrot.slane %v316, 4
        %v318 = vadd.f32 %v316, %v317
        %v319 = vrot.slane %v318, 2
        %v320 = vadd.f32 %v318, %v319
        %v321 = vrot.slane %v320, 1
        %v322 = vadd.f32 %v320, %v321
        %v323 = vsel %vm245, %v234, 0.0
        %v324 = vrot.slane %v323, 4
        %v325 = vadd.f32 %v323, %v324
        %v326 = vrot.slane %v325, 2
        %v327 = vadd.f32 %v325, %v326
        %v328 = vrot.slane %v327, 1
        %v329 = vadd.f32 %v327, %v328
        %v330 = vsel %vm245, %v219, 0.0
        %v331 = vrot.slane %v330, 4
        %v332 = vadd.f32 %v330, %v331
        %v333 = vrot.slane %v332, 2
        %v334 = vadd.f32 %v332, %v333
        %v335 = vrot.slane %v334, 1
        %v336 = vadd.f32 %v334, %v335
        %v337 = vsel %vm245, %v235, 0.0
        %v338 = vrot.slane %v337, 4
        %v339 = vadd.f32 %v337, %v338
        %v340 = vrot.slane %v339, 2
        %v341 = vadd.f32 %v339, %v340
        %v342 = vrot.slane %v341, 1
        %v343 = vadd.f32 %v341, %v342
        %v344 = vsel %vm245, %v220, 0.0
        %v345 = vrot.slane %v344, 4
        %v346 = vadd.f32 %v344, %v345
        %v347 = vrot.slane %v346, 2
        %v348 = vadd.f32 %v346, %v347
        %v349 = vrot.slane %v348, 1
        %v350 = vadd.f32 %v348, %v349
        %v351 = vsel %vm245, %v236, 0.0
        %v352 = vrot.slane %v351, 4
        %v353 = vadd.f32 %v351, %v352
        %v354 = vrot.slane %v353, 2
        %v355 = vadd.f32 %v353, %v354
        %v356 = vrot.slane %v355, 1
        %v357 = vadd.f32 %v355, %v356
        %vm374 = vcmask 1041409
        %v375 = vsel %vm374, %v266, %v252
        %vm376 = vcmask 1042434
        %v377 = vsel %vm376, %v280, %v375
        %vm378 = vcmask 1043459
        %v379 = vsel %vm378, %v294, %v377
        %vm380 = vcmask 1044484
        %v381 = vsel %vm380, %v308, %v379
        %vm382 = vcmask 1045509
        %v383 = vsel %vm382, %v322, %v381
        %vm384 = vcmask 1046534
        %v385 = vsel %vm384, %v336, %v383
        %vm386 = vcmask 1047559
        %v387 = vsel %vm386, %v350, %v385
        %v388 = vsel %vm374, %v273, %v259
        %v389 = vsel %vm376, %v287, %v388
        %v390 = vsel %vm378, %v301, %v389
        %v391 = vsel %vm380, %v315, %v390
        %v392 = vsel %vm382, %v329, %v391
        %v393 = vsel %vm384, %v343, %v392
        %v394 = vsel %vm386, %v357, %v393
        %397 = vst [vmem:[%s176] sm:$0xff] %v387
        %398 = vst [vmem:[%s176 + $0x8] sm:$0xff] %v394
        %v399 = vmul.f32 %v177, %v189
        %v400 = vmul.f32 %v177, %v190
        %v401 = vmul.f32 %v177, %v191
        %v402 = vmul.f32 %v177, %v192
        %v403 = vmul.f32 %v177, %v193
        %v404 = vmul.f32 %v177, %v194
        %v405 = vmul.f32 %v177, %v195
        %v406 = vmul.f32 %v177, %v196
        %v407 = vmul.f32 %v179, %v180
        %v408 = vmul.f32 %v179, %v181
        %v409 = vmul.f32 %v179, %v182
        %v410 = vmul.f32 %v179, %v183
        %v411 = vmul.f32 %v179, %v184
        %v412 = vmul.f32 %v179, %v185
        %v413 = vmul.f32 %v179, %v186
        %v414 = vmul.f32 %v179, %v187
        %v415 = vadd.f32 %v399, %v407
        %v416 = vadd.f32 %v400, %v408
        %v417 = vadd.f32 %v401, %v409
        %v418 = vadd.f32 %v402, %v410
        %v419 = vadd.f32 %v403, %v411
        %v420 = vadd.f32 %v404, %v412
        %v421 = vadd.f32 %v405, %v413
        %v422 = vadd.f32 %v406, %v414
        %v431 = vcombine.high %v415, %v415
        %v432 = vcombine.high %v416, %v416
        %v433 = vcombine.high %v417, %v417
        %v434 = vcombine.high %v418, %v418
        %v435 = vcombine.high %v419, %v419
        %v436 = vcombine.high %v420, %v420
        %v437 = vcombine.high %v421, %v421
        %v438 = vcombine.high %v422, %v422
        %v447 = vsel %vm245, %v415, 0.0
        %v448 = vrot.slane %v447, 4
        %v449 = vadd.f32 %v447, %v448
        %v450 = vrot.slane %v449, 2
        %v451 = vadd.f32 %v449, %v450
        %v452 = vrot.slane %v451, 1
        %v453 = vadd.f32 %v451, %v452
        %v454 = vsel %vm245, %v431, 0.0
        %v455 = vrot.slane %v454, 4
        %v456 = vadd.f32 %v454, %v455
        %v457 = vrot.slane %v456, 2
        %v458 = vadd.f32 %v456, %v457
        %v459 = vrot.slane %v458, 1
        %v460 = vadd.f32 %v458, %v459
        %v461 = vsel %vm245, %v416, 0.0
        %v462 = vrot.slane %v461, 4
        %v463 = vadd.f32 %v461, %v462
        %v464 = vrot.slane %v463, 2
        %v465 = vadd.f32 %v463, %v464
        %v466 = vrot.slane %v465, 1
        %v467 = vadd.f32 %v465, %v466
        %v468 = vsel %vm245, %v432, 0.0
        %v469 = vrot.slane %v468, 4
        %v470 = vadd.f32 %v468, %v469
        %v471 = vrot.slane %v470, 2
        %v472 = vadd.f32 %v470, %v471
        %v473 = vrot.slane %v472, 1
        %v474 = vadd.f32 %v472, %v473
        %v475 = vsel %vm245, %v417, 0.0
        %v476 = vrot.slane %v475, 4
        %v477 = vadd.f32 %v475, %v476
        %v478 = vrot.slane %v477, 2
        %v479 = vadd.f32 %v477, %v478
        %v480 = vrot.slane %v479, 1
        %v481 = vadd.f32 %v479, %v480
        %v482 = vsel %vm245, %v433, 0.0
        %v483 = vrot.slane %v482, 4
        %v484 = vadd.f32 %v482, %v483
        %v485 = vrot.slane %v484, 2
        %v486 = vadd.f32 %v484, %v485
        %v487 = vrot.slane %v486, 1
        %v488 = vadd.f32 %v486, %v487
        %v489 = vsel %vm245, %v418, 0.0
        %v490 = vrot.slane %v489, 4
        %v491 = vadd.f32 %v489, %v490
        %v492 = vrot.slane %v491, 2
        %v493 = vadd.f32 %v491, %v492
        %v494 = vrot.slane %v493, 1
        %v495 = vadd.f32 %v493, %v494
        %v496 = vsel %vm245, %v434, 0.0
        %v497 = vrot.slane %v496, 4
        %v498 = vadd.f32 %v496, %v497
        %v499 = vrot.slane %v498, 2
        %v500 = vadd.f32 %v498, %v499
        %v501 = vrot.slane %v500, 1
        %v502 = vadd.f32 %v500, %v501
        %v503 = vsel %vm245, %v419, 0.0
        %v504 = vrot.slane %v503, 4
        %v505 = vadd.f32 %v503, %v504
        %v506 = vrot.slane %v505, 2
        %v507 = vadd.f32 %v505, %v506
        %v508 = vrot.slane %v507, 1
        %v509 = vadd.f32 %v507, %v508
        %v510 = vsel %vm245, %v435, 0.0
        %v511 = vrot.slane %v510, 4
        %v512 = vadd.f32 %v510, %v511
        %v513 = vrot.slane %v512, 2
        %v514 = vadd.f32 %v512, %v513
        %v515 = vrot.slane %v514, 1
        %v516 = vadd.f32 %v514, %v515
        %v517 = vsel %vm245, %v420, 0.0
        %v518 = vrot.slane %v517, 4
        %v519 = vadd.f32 %v517, %v518
        %v520 = vrot.slane %v519, 2
        %v521 = vadd.f32 %v519, %v520
        %v522 = vrot.slane %v521, 1
        %v523 = vadd.f32 %v521, %v522
        %v524 = vsel %vm245, %v436, 0.0
        %v525 = vrot.slane %v524, 4
        %v526 = vadd.f32 %v524, %v525
        %v527 = vrot.slane %v526, 2
        %v528 = vadd.f32 %v526, %v527
        %v529 = vrot.slane %v528, 1
        %v530 = vadd.f32 %v528, %v529
        %v531 = vsel %vm245, %v421, 0.0
        %v532 = vrot.slane %v531, 4
        %v533 = vadd.f32 %v531, %v532
        %v534 = vrot.slane %v533, 2
        %v535 = vadd.f32 %v533, %v534
        %v536 = vrot.slane %v535, 1
        %v537 = vadd.f32 %v535, %v536
        %v538 = vsel %vm245, %v437, 0.0
        %v539 = vrot.slane %v538, 4
        %v540 = vadd.f32 %v538, %v539
        %v541 = vrot.slane %v540, 2
        %v542 = vadd.f32 %v540, %v541
        %v543 = vrot.slane %v542, 1
        %v544 = vadd.f32 %v542, %v543
        %v545 = vsel %vm245, %v422, 0.0
        %v546 = vrot.slane %v545, 4
        %v547 = vadd.f32 %v545, %v546
        %v548 = vrot.slane %v547, 2
        %v549 = vadd.f32 %v547, %v548
        %v550 = vrot.slane %v549, 1
        %v551 = vadd.f32 %v549, %v550
        %v552 = vsel %vm245, %v438, 0.0
        %v553 = vrot.slane %v552, 4
        %v554 = vadd.f32 %v552, %v553
        %v555 = vrot.slane %v554, 2
        %v556 = vadd.f32 %v554, %v555
        %v557 = vrot.slane %v556, 1
        %v558 = vadd.f32 %v556, %v557
        %v575 = vsel %vm374, %v467, %v453
        %v576 = vsel %vm376, %v481, %v575
        %v577 = vsel %vm378, %v495, %v576
        %v578 = vsel %vm380, %v509, %v577
        %v579 = vsel %vm382, %v523, %v578
        %v580 = vsel %vm384, %v537, %v579
        %v581 = vsel %vm386, %v551, %v580
        %v582 = vsel %vm374, %v474, %v460
        %v583 = vsel %vm376, %v488, %v582
        %v584 = vsel %vm378, %v502, %v583
        %v585 = vsel %vm380, %v516, %v584
        %v586 = vsel %vm382, %v530, %v585
        %v587 = vsel %vm384, %v544, %v586
        %v588 = vsel %vm386, %v558, %v587
        %s591 = scalar_lea.vmem %s176, 16 [#allocation7]
        %592 = vst [vmem:[%s591] sm:$0xff] %v581
        %593 = vst [vmem:[%s591 + $0x8] sm:$0xff] %v588
        %s594 = sand.u32 %s75, 1
        %s595 = scalar_lea.sflag [#allocation4], %s594
        %s596 = sand.u32 %s75, 1
        %s597 = smul.addr %s596, 32
        %s598 = scalar_lea.vmem [#allocation7], %s597
        // Predicated region
        $region37: #{tpu_custom_call.1} parent=27 // pred_check
          %p599 = pneg %p85
        $region38: #{tpu_custom_call.1} parent=27 // pred_check_branch
          %601 = sbr.rel (%p599) target = $region40
        $region39: #{tpu_custom_call.1} parent=27 // pred_region
          %s603 = ssub.s32 512, 512
          %604 = vsyncadd %s595, %s603
          %s605 = smul.addr %s20, 4
          %s606 = smul.addr %s605, 128
          %s607 = scalar_lea.hbm %s2, %s606
          %s608 = sshll.u32 %s598, 4
          %s609 = int_to_ptr.vmem [resolvable:$true] %s608
          %614 = dma.vmem_to_hbm [thread:$0]  %s609, 512, %s607, %s595, 256, 256, 16
        $region40: #{tpu_custom_call.1} parent=27 // pred_fallthru
          _
      $region28: #{tpu_custom_call.1} parent=5 // pred_fallthru
        _
      %p615 = scmp.le.s32.totalorder 2, %s15
      // Predicated region
      $region41: #{tpu_custom_call.1} parent=5 // pred_check
        %p616 = pneg %p615
      $region42: #{tpu_custom_call.1} parent=5 // pred_check_branch
        %618 = sbr.rel (%p616) target = $region44
      $region43: #{tpu_custom_call.1} parent=5 // pred_region
        %s619 = ssub.s32 %s15, 2
        // Predicated region
        $region45: #{tpu_custom_call.1} parent=43 // pred_check
          %p620 = pneg %p91
        $region46: #{tpu_custom_call.1} parent=43 // pred_check_branch
          %622 = sbr.rel (%p620) target = $region48
        $region47: #{tpu_custom_call.1} parent=43 // pred_region
          %s623 = sand.u32 %s76, 1
          %s624 = scalar_lea.sflag [#allocation4], %s623
          %s625 = sand.u32 %s76, 1
          %s626 = smul.addr %s625, 32
          %s627 = scalar_lea.vmem [#allocation7], %s626
          %628 = dma.done %s624, 512
        $region48: #{tpu_custom_call.1} parent=43 // pred_fallthru
          _
      $region44: #{tpu_custom_call.1} parent=5 // pred_fallthru
        _
    $region6: #{tpu_custom_call.1} parent=1 // loop_footer
      %s19 = sadd.s32 1, %s15
    $region7: #{tpu_custom_call.1} parent=1 // loop_footer_branch
      %14 = sbr.rel target = $region3
    $region8: #{tpu_custom_call.1} parent=1 // loop_exit
      _
    %629 = vsyncpa [#allocation3], 1
    %s630 = scalar_lea.sflag [#allocation3], 1
    %631 = vsyncpa %s630, 1
    %632 = vsyncpa [#allocation6], 1
    %633 = vsyncpa [#allocation4], 1
    %s634 = scalar_lea.sflag [#allocation4], 1
    %635 = vsyncpa %s634, 1

</llo_original>
